<compile_context>
chip_gen: v5e
topology: v5e:2x2
jax: 0.10.0
libtpu: 0.0.40
codegen_flags: <defaults>
</compile_context>

<pallas_src>
import functools

import jax
import jax.numpy as jnp
from jax.experimental import pallas as pl
from jax.experimental.pallas import tpu as pltpu

EPS = 1e-5
LANE = 128
CONTRACT_PAD = 16  # bf16 sublane packing for the pure-input contraction dim


def _round_up(n, m):
    return ((n + m - 1) // m) * m


# ---------------- fused Pallas kernel (the hot path) ----------------

def _make_fused_mlp_kernel(n_layers, last_layer_act, final_dim):
    """Kernel body chaining every layer on VMEM-resident refs.

    refs = (x, [w, gamma, beta] * (n_layers-1), w_last, b_last, out)
    Hidden-layer biases are omitted: they cancel exactly under training-mode BN.
    """

    def kernel(*refs):
        h = refs[0][...]                                 # f32 activations
        idx = 1
        for layer in range(n_layers):
            is_last = layer == n_layers - 1
            w = refs[idx][...]                           # bf16 weights
            # MXU matmul: bf16 operands, f32 accumulation.
            z = jnp.dot(h.astype(w.dtype), w, preferred_element_type=jnp.float32)
            if not is_last:
                gamma = refs[idx + 1][...]
                beta = refs[idx + 2][...]
                # BatchNorm1d (training-mode), two-pass variance, all f32.
                mean = jnp.mean(z, axis=0, keepdims=True)
                zc = z - mean
                var = jnp.mean(zc * zc, axis=0, keepdims=True)  # biased variance
                scale = gamma * jax.lax.rsqrt(var + EPS)        # EUP rsqrt
                z = jnp.maximum(zc * scale + beta, 0.0)         # BN + ReLU fused
                idx += 3
            else:
                z = z + refs[idx + 1][...]               # final layer keeps bias
                idx += 2
            h = z
        if last_layer_act == "ReLU":
            # ReLU only on the first final_dim // 2 (real) channels, in-kernel.
            half = final_dim // 2
            col = jax.lax.broadcasted_iota(jnp.int32, h.shape, dimension=1)
            h = jnp.where(col < half, jnp.maximum(h, 0.0), h)
        refs[idx][...] = h                               # lane-dense padded slab

    return kernel


# ---------------- one-time parameter preparation (NOT per call) ----------------

def prepare_params(params, weights_dtype=jnp.bfloat16):
    """Pad + cast parameters once. params: list of dicts with w [in,out], b, (gamma, beta).

    Zero-padded gamma/beta/bias keep padded lanes at exactly 0 through BN/ReLU,
    so padding stays inert across the whole chain.
    """
    n_layers = len(params)
    in_dim = params[0]["w"].shape[0]
    in_pad = _round_up(in_dim, CONTRACT_PAD)     # contraction-only dim: sublane pad
    prev_pad = in_pad
    flat = []
    for s, p in enumerate(params):
        fi, fo = p["w"].shape
        fo_pad = _round_up(fo, LANE)             # output/activation dim: lane pad
        w = jnp.pad(p["w"], ((0, prev_pad - fi), (0, fo_pad - fo))).astype(weights_dtype)
        flat.append(w)
        if s < n_layers - 1:
            # Hidden-layer bias dropped: exactly cancelled by BN mean subtraction.
            flat.append(jnp.pad(p["gamma"], (0, fo_pad - fo))
                        .reshape(1, fo_pad).astype(jnp.float32))
            flat.append(jnp.pad(p["beta"], (0, fo_pad - fo))
                        .reshape(1, fo_pad).astype(jnp.float32))
        else:
            flat.append(jnp.pad(p["b"], (0, fo_pad - fo))
                        .reshape(1, fo_pad).astype(jnp.float32))
        prev_pad = fo_pad
    return dict(
        flat=tuple(flat),
        n_layers=n_layers,
        in_dim=in_dim,
        in_pad=in_pad,
        final_dim=params[-1]["w"].shape[1],
        out_pad=prev_pad,
    )


# ---------------- jitted forward: pad x, one fused pallas_call, slice ----------------

@functools.partial(
    jax.jit,
    static_argnames=("n_layers", "in_dim", "in_pad", "final_dim", "out_pad",
                     "last_layer_act"),
)
def _mlp_forward_impl(flat, x, *, n_layers, in_dim, in_pad, final_dim, out_pad,
                      last_layer_act):
    B = x.shape[0]
    xp = x.astype(jnp.float32)
    if in_pad != in_dim:
        xp = jnp.pad(xp, ((0, 0), (0, in_pad - in_dim)))
    inputs = (xp,) + tuple(flat)

    # Cost estimate + VMEM budget from the actual resident footprint.
    flops = 0
    transcendentals = 0
    resident = int(xp.size) * 4
    idx, prev = 0, in_pad
    for layer in range(n_layers):
        w = flat[idx]
        fo_pad = w.shape[1]
        flops += 2 * B * prev * fo_pad
        resident += int(w.size) * w.dtype.itemsize
        if layer < n_layers - 1:
            transcendentals += fo_pad                    # one rsqrt per channel
            resident += int(flat[idx + 1].size) * 4 + int(flat[idx + 2].size) * 4
            idx += 3
        else:
            resident += int(flat[idx + 1].size) * 4
            idx += 2
        resident += B * fo_pad * 4                       # activation slab
        prev = fo_pad
    bytes_accessed = sum(int(a.size) * a.dtype.itemsize for a in inputs) + B * out_pad * 4
    vmem_limit = int(min(100 * 1024 * 1024, max(4 * resident, 16 * 1024 * 1024)))

    vmem_spec = pl.BlockSpec(memory_space=pltpu.MemorySpace.VMEM)
    out_padded = pl.pallas_call(
        _make_fused_mlp_kernel(n_layers, last_layer_act, final_dim),
        out_shape=jax.ShapeDtypeStruct((B, out_pad), jnp.float32),
        in_specs=[vmem_spec] * len(inputs),
        out_specs=vmem_spec,
        cost_estimate=pl.CostEstimate(
            flops=flops,
            transcendentals=transcendentals,
            bytes_accessed=bytes_accessed,
        ),
        compiler_params=pltpu.CompilerParams(vmem_limit_bytes=vmem_limit),
    )(*inputs)

    # Single cheap slice back to the real feature width.
    return out_padded[:, :final_dim]


def mlp_forward(prepared, x, last_layer_act="linear"):
    """Fused Pallas MLP forward on pre-padded params (see prepare_params)."""
    return _mlp_forward_impl(
        prepared["flat"], x,
        n_layers=prepared["n_layers"],
        in_dim=prepared["in_dim"],
        in_pad=prepared["in_pad"],
        final_dim=prepared["final_dim"],
        out_pad=prepared["out_pad"],
        last_layer_act=last_layer_act,
    )


# ---------------- parameter init (deterministic synthetic params) ----------------

def init_mlp_params(key, sizes):
    """Weights stored transposed as [in_features, out_features] so kernel does x @ W."""
    params = []
    n_layers = len(sizes) - 1
    for s in range(n_layers):
        key, kw, kb = jax.random.split(key, 3)
        fan_in, fan_out = sizes[s], sizes[s + 1]
        bound = 1.0 / jnp.sqrt(fan_in)
        w = jax.random.uniform(kw, (fan_in, fan_out), jnp.float32, -bound, bound)
        b = jax.random.uniform(kb, (fan_out,), jnp.float32, -bound, bound)
        if s < n_layers - 1:
            gamma = jnp.ones((fan_out,), jnp.float32)   # PyTorch BN default init
            beta = jnp.zeros((fan_out,), jnp.float32)
            params.append(dict(w=w, b=b, gamma=gamma, beta=beta))
        else:
            params.append(dict(w=w, b=b))
    return params


# ---------------- reference (plain JAX) for sanity check ----------------

def mlp_reference(params, x, last_layer_act="linear", matmul_dtype=jnp.float32):
    n_layers = len(params)
    h = x
    for s, p in enumerate(params):
        z = jnp.dot(h.astype(matmul_dtype), p["w"].astype(matmul_dtype),
                    preferred_element_type=jnp.float32) + p["b"]
        if s < n_layers - 1:
            mean = jnp.mean(z, axis=0, keepdims=True)
            var = jnp.mean((z - mean) ** 2, axis=0, keepdims=True)
            z = (z - mean) / jnp.sqrt(var + EPS) * p["gamma"] + p["beta"]
            z = jnp.maximum(z, 0.0)
        h = z
    if last_layer_act == "ReLU":
        dim = h.shape[1] // 2
        h = jnp.concatenate([jnp.maximum(h[:, :dim], 0.0), h[:, dim:]], axis=1)
    return h


if __name__ == "__main__":
    sizes = [32, 64, 48]   # MLP(sizes=[32, 64, 48], batch_norm=True, last_layer_act='linear')
    batch = 8              # NOTE: real deployments should use B >= 128 for MXU utilization

    x = jax.random.normal(jax.random.PRNGKey(0), (batch, sizes[0]), jnp.float32)
    params = init_mlp_params(jax.random.PRNGKey(1), sizes)

    # One-time padding / bf16 conversion (outside the hot path).
    prepared = prepare_params(params, weights_dtype=jnp.bfloat16)

    # default last_layer_act='linear'
    out = jax.block_until_ready(mlp_forward(prepared, x))
    assert out.shape == (batch, sizes[-1])
    # Matched-precision reference (bf16 matmuls like the kernel): tight tolerance.
    ref_m = mlp_reference(params, x, matmul_dtype=jnp.bfloat16)
    assert jnp.allclose(out, ref_m, atol=2e-3, rtol=2e-3), "mismatch vs bf16-matched reference"
    # Full-f32 reference: loose tolerance reflecting bf16 operand rounding.
    ref_f = mlp_reference(params, x)
    assert jnp.allclose(out, ref_f, atol=5e-2, rtol=5e-2), "mismatch vs f32 reference"

    # also exercise the in-kernel half-ReLU path (last_layer_act='ReLU')
    out_r = jax.block_until_ready(mlp_forward(prepared, x, last_layer_act="ReLU"))
    ref_r = mlp_reference(params, x, last_layer_act="ReLU", matmul_dtype=jnp.bfloat16)
    assert jnp.allclose(out_r, ref_r, atol=2e-3, rtol=2e-3), "mismatch vs reference (ReLU)"

    print("KERNEL_OK")
</pallas_src>

<mosaic_0001>
module attributes {stable_mosaic.version = 11 : i64} {
  func.func @kernel(%arg0: memref<8x32xf32, #tpu.memory_space<vmem>>, %arg1: memref<32x128xbf16, #tpu.memory_space<vmem>>, %arg2: memref<1x128xf32, #tpu.memory_space<vmem>>, %arg3: memref<1x128xf32, #tpu.memory_space<vmem>>, %arg4: memref<128x128xbf16, #tpu.memory_space<vmem>>, %arg5: memref<1x128xf32, #tpu.memory_space<vmem>>, %arg6: memref<8x128xf32, #tpu.memory_space<vmem>>) attributes {dimension_semantics = [], scalar_prefetch = 0 : i64, scratch_operands = 0 : i64, tpu.core_type = #tpu.core_type<tc>} {
    %c0 = arith.constant 0 : index
    %c0_0 = arith.constant 0 : index
    %0 = vector.load %arg0[%c0, %c0_0] : memref<8x32xf32, #tpu.memory_space<vmem>>, vector<8x32xf32>
    %c0_1 = arith.constant 0 : index
    %c0_2 = arith.constant 0 : index
    %1 = vector.load %arg1[%c0_1, %c0_2] : memref<32x128xbf16, #tpu.memory_space<vmem>>, vector<32x128xbf16>
    %2 = arith.truncf %0 : vector<8x32xf32> to vector<8x32xbf16>
    %cst = arith.constant dense<0.000000e+00> : vector<8x128xf32>
    %3 = tpu.matmul %2, %1, %cst {dimension_numbers = #tpu.dot_dimension_numbers<[1], [0], [0], [1], [0, 0, 1, 1], [], []>} : vector<8x32xbf16>, vector<32x128xbf16>, vector<8x128xf32> -> vector<8x128xf32>
    %c0_3 = arith.constant 0 : index
    %c0_4 = arith.constant 0 : index
    %4 = vector.load %arg2[%c0_3, %c0_4] : memref<1x128xf32, #tpu.memory_space<vmem>>, vector<1x128xf32>
    %c0_5 = arith.constant 0 : index
    %c0_6 = arith.constant 0 : index
    %5 = vector.load %arg3[%c0_5, %c0_6] : memref<1x128xf32, #tpu.memory_space<vmem>>, vector<1x128xf32>
    %cst_7 = arith.constant dense<0.000000e+00> : vector<128xf32>
    %6 = vector.multi_reduction <add>, %3, %cst_7 [0] : vector<8x128xf32> to vector<128xf32>
    %7 = vector.shape_cast %6 : vector<128xf32> to vector<1x128xf32>
    %cst_8 = arith.constant 8.000000e+00 : f32
    %8 = vector.broadcast %cst_8 : f32 to vector<1x128xf32>
    %9 = arith.divf %7, %8 : vector<1x128xf32>
    %10 = vector.broadcast %9 : vector<1x128xf32> to vector<8x128xf32>
    %11 = arith.subf %3, %10 : vector<8x128xf32>
    %12 = arith.mulf %11, %11 : vector<8x128xf32>
    %cst_9 = arith.constant dense<0.000000e+00> : vector<128xf32>
    %13 = vector.multi_reduction <add>, %12, %cst_9 [0] : vector<8x128xf32> to vector<128xf32>
    %14 = vector.shape_cast %13 : vector<128xf32> to vector<1x128xf32>
    %cst_10 = arith.constant 8.000000e+00 : f32
    %15 = vector.broadcast %cst_10 : f32 to vector<1x128xf32>
    %16 = arith.divf %14, %15 : vector<1x128xf32>
    %cst_11 = arith.constant 9.99999974E-6 : f32
    %17 = vector.broadcast %cst_11 : f32 to vector<1x128xf32>
    %18 = arith.addf %16, %17 : vector<1x128xf32>
    %19 = math.rsqrt %18 : vector<1x128xf32>
    %20 = arith.mulf %4, %19 : vector<1x128xf32>
    %21 = vector.broadcast %20 : vector<1x128xf32> to vector<8x128xf32>
    %22 = arith.mulf %11, %21 : vector<8x128xf32>
    %23 = vector.broadcast %5 : vector<1x128xf32> to vector<8x128xf32>
    %24 = arith.addf %22, %23 : vector<8x128xf32>
    %cst_12 = arith.constant 0.000000e+00 : f32
    %25 = vector.broadcast %cst_12 : f32 to vector<8x128xf32>
    %26 = arith.maximumf %24, %25 : vector<8x128xf32>
    %c0_13 = arith.constant 0 : index
    %c0_14 = arith.constant 0 : index
    %27 = vector.load %arg4[%c0_13, %c0_14] : memref<128x128xbf16, #tpu.memory_space<vmem>>, vector<128x128xbf16>
    %28 = arith.truncf %26 : vector<8x128xf32> to vector<8x128xbf16>
    %cst_15 = arith.constant dense<0.000000e+00> : vector<8x128xf32>
    %29 = tpu.matmul %28, %27, %cst_15 {dimension_numbers = #tpu.dot_dimension_numbers<[1], [0], [0], [1], [0, 0, 1, 1], [], []>} : vector<8x128xbf16>, vector<128x128xbf16>, vector<8x128xf32> -> vector<8x128xf32>
    %c0_16 = arith.constant 0 : index
    %c0_17 = arith.constant 0 : index
    %30 = vector.load %arg5[%c0_16, %c0_17] : memref<1x128xf32, #tpu.memory_space<vmem>>, vector<1x128xf32>
    %31 = vector.broadcast %30 : vector<1x128xf32> to vector<8x128xf32>
    %32 = arith.addf %29, %31 : vector<8x128xf32>
    %c0_18 = arith.constant 0 : index
    %c0_19 = arith.constant 0 : index
    %33 = vector.load %arg6[%c0_18, %c0_19] : memref<8x128xf32, #tpu.memory_space<vmem>>, vector<8x128xf32>
    tpu.vector_store %arg6[%c0_18, %c0_19], %32 {strides = array<i32>} : memref<8x128xf32, #tpu.memory_space<vmem>>, vector<8x128xf32>,
    return
  }
}

</mosaic_0001>

<llo_original>
// kernel: _mlp_forward_impl.1
$region0: #{_mlp_forward_impl.1}
  #allocation0 [shape = 'u32[]', space=smem, size = 0x4, offset = 0x4, fixed_abs, tag = 'smem constant byte address 0x4 - core index']
  #allocation1 [shape = 'u32[72,128]{1,0:T(1,128)}', space=vmem, size = 0x9000, scoped, tag = 'internal scratch']
  %s0 = inlined_call_operand.hbm [shape: f32[8,32], index: 0, kind: input, shape index: {}]
  %s1 = inlined_call_operand.hbm [shape: bf16[32,128], index: 1, kind: input, shape index: {}]
  %s2 = inlined_call_operand.hbm [shape: f32[1,128], index: 2, kind: input, shape index: {}]
  %s3 = inlined_call_operand.vmem [shape: f32[1,128], index: 3, kind: input, shape index: {}]
  %s4 = inlined_call_operand.hbm [shape: bf16[128,128], index: 4, kind: input, shape index: {}]
  %s5 = inlined_call_operand.vmem [shape: f32[1,128], index: 5, kind: input, shape index: {}]
  %s6 = inlined_call_operand.hbm [shape: f32[8,128], index: 6, kind: output, shape index: {}]
  %s7 = sld [smem:[#allocation0]]
  $region50: #{_mlp_forward_impl.1} parent=0
    _
  %s9 = ssub.s32 1, %s7
  %s10 = scalar_select 0, %s9, %s7
  $region1: #{_mlp_forward_impl.1} parent=0
    #allocation2 [shape = 'u8[4096]{0}', space=vmem, size = 0x1000, scoped, tag = 'input window, operand 0, single buffered']
    #allocation3 [shape = 's32[1]{0}', space=sflag, size = 0x4, scoped, tag = 'scoped memory for _mlp_forward_impl.1']
    #allocation4 [shape = 's32[1]{0}', space=sflag, size = 0x4, scoped, tag = 'scoped memory for _mlp_forward_impl.1']
    #allocation5 [shape = 'u8[8192]{0}', space=vmem, size = 0x2000, scoped, tag = 'input window, operand 1, single buffered']
    #allocation6 [shape = 's32[1]{0}', space=sflag, size = 0x4, scoped, tag = 'scoped memory for _mlp_forward_impl.1']
    #allocation7 [shape = 'u8[512]{0}', space=vmem, size = 0x400, scoped, tag = 'input window, operand 2, single buffered']
    #allocation8 [shape = 'u8[32768]{0}', space=vmem, size = 0x8000, scoped, tag = 'input window, operand 4, single buffered']
    #allocation9 [shape = 's32[1]{0}', space=sflag, size = 0x4, scoped, tag = 'scoped memory for _mlp_forward_impl.1']
    #allocation10 [shape = 'u8[4096]{0}', space=vmem, size = 0x1000, scoped, tag = 'output window, operand 0, single buffered']
    %11 = vsyncpa [#allocation3], 0
    %12 = vsyncpa [#allocation6], 0
    %13 = vsyncpa [#allocation9], 0
    %14 = vsyncpa [#allocation4], 0
    // Predicated region
    $region2: #{_mlp_forward_impl.1} parent=1 // pred_check
      _
    $region3: #{_mlp_forward_impl.1} parent=1 // pred_check_branch
      %16 = sbr.rel (0) target = $region5
    $region4: #{_mlp_forward_impl.1} parent=1 // pred_region
      %18 = vsyncadd [#allocation3], 0
      %s20 = sshll.u32 %s0, 4
      %s21 = int_to_ptr.hbm [resolvable:$true] %s20
      %s22 = sshll.u32 [#allocation2], 4
      %s23 = int_to_ptr.vmem [resolvable:$true] %s22
      %25 = dma.hbm_to_vmem [thread:$0]  %s21, 128, %s23, [#allocation3]
    $region5: #{_mlp_forward_impl.1} parent=1 // pred_fallthru
      _
    // Predicated region
    $region6: #{_mlp_forward_impl.1} parent=1 // pred_check
      _
    $region7: #{_mlp_forward_impl.1} parent=1 // pred_check_branch
      %27 = sbr.rel (0) target = $region9
    $region8: #{_mlp_forward_impl.1} parent=1 // pred_region
      %29 = vsyncadd [#allocation6], 0
      %s30 = sshll.u32 %s1, 4
      %s31 = int_to_ptr.hbm [resolvable:$true] %s30
      %s32 = sshll.u32 [#allocation5], 4
      %s33 = int_to_ptr.vmem [resolvable:$true] %s32
      %38 = dma.hbm_to_vmem [thread:$0]  %s31, 256, %s33, [#allocation6], 64, 64, 4
    $region9: #{_mlp_forward_impl.1} parent=1 // pred_fallthru
      _
    // Predicated region
    $region10: #{_mlp_forward_impl.1} parent=1 // pred_check
      _
    $region11: #{_mlp_forward_impl.1} parent=1 // pred_check_branch
      %40 = sbr.rel (0) target = $region13
    $region12: #{_mlp_forward_impl.1} parent=1 // pred_region
      %42 = vsyncadd [#allocation6], 0
      %s44 = sshll.u32 %s2, 4
      %s45 = int_to_ptr.hbm [resolvable:$true] %s44
      %s46 = sshll.u32 [#allocation7], 4
      %s47 = int_to_ptr.vmem [resolvable:$true] %s46
      %49 = dma.hbm_to_vmem [thread:$0]  %s45, 16, %s47, [#allocation6]
    $region13: #{_mlp_forward_impl.1} parent=1 // pred_fallthru
      _
    // Predicated region
    $region14: #{_mlp_forward_impl.1} parent=1 // pred_check
      _
    $region15: #{_mlp_forward_impl.1} parent=1 // pred_check_branch
      %51 = sbr.rel (0) target = $region17
    $region16: #{_mlp_forward_impl.1} parent=1 // pred_region
      _
    $region17: #{_mlp_forward_impl.1} parent=1 // pred_fallthru
      _
    // Predicated region
    $region18: #{_mlp_forward_impl.1} parent=1 // pred_check
      _
    $region19: #{_mlp_forward_impl.1} parent=1 // pred_check_branch
      %53 = sbr.rel (0) target = $region21
    $region20: #{_mlp_forward_impl.1} parent=1 // pred_region
      %55 = vsyncadd [#allocation9], 0
      %s56 = sshll.u32 %s4, 4
      %s57 = int_to_ptr.hbm [resolvable:$true] %s56
      %s58 = sshll.u32 [#allocation8], 4
      %s59 = int_to_ptr.vmem [resolvable:$true] %s58
      %64 = dma.hbm_to_vmem [thread:$0]  %s57, 1024, %s59, [#allocation9], 64, 64, 4
    $region21: #{_mlp_forward_impl.1} parent=1 // pred_fallthru
      _
    // Predicated region
    $region22: #{_mlp_forward_impl.1} parent=1 // pred_check
      _
    $region23: #{_mlp_forward_impl.1} parent=1 // pred_check_branch
      %66 = sbr.rel (0) target = $region25
    $region24: #{_mlp_forward_impl.1} parent=1 // pred_region
      _
    $region25: #{_mlp_forward_impl.1} parent=1 // pred_fallthru
      _
    // Predicated region
    $region26: #{_mlp_forward_impl.1} parent=1 // pred_check
      _
    $region27: #{_mlp_forward_impl.1} parent=1 // pred_check_branch
      %68 = sbr.rel (0) target = $region29
    $region28: #{_mlp_forward_impl.1} parent=1 // pred_region
      %70 = dma.done [#allocation3], 128
    $region29: #{_mlp_forward_impl.1} parent=1 // pred_fallthru
      _
    // Predicated region
    $region30: #{_mlp_forward_impl.1} parent=1 // pred_check
      _
    $region31: #{_mlp_forward_impl.1} parent=1 // pred_check_branch
      %72 = sbr.rel (0) target = $region33
    $region32: #{_mlp_forward_impl.1} parent=1 // pred_region
      %74 = dma.done [#allocation6], 256
    $region33: #{_mlp_forward_impl.1} parent=1 // pred_fallthru
      _
    // Predicated region
    $region34: #{_mlp_forward_impl.1} parent=1 // pred_check
      _
    $region35: #{_mlp_forward_impl.1} parent=1 // pred_check_branch
      %76 = sbr.rel (0) target = $region37
    $region36: #{_mlp_forward_impl.1} parent=1 // pred_region
      %78 = dma.done [#allocation6], 16
    $region37: #{_mlp_forward_impl.1} parent=1 // pred_fallthru
      _
    // Predicated region
    $region38: #{_mlp_forward_impl.1} parent=1 // pred_check
      _
    $region39: #{_mlp_forward_impl.1} parent=1 // pred_check_branch
      %80 = sbr.rel (0) target = $region41
    $region40: #{_mlp_forward_impl.1} parent=1 // pred_region
      %82 = dma.done [#allocation9], 1024
    $region41: #{_mlp_forward_impl.1} parent=1 // pred_fallthru
      _
    %v84 = vld [vmem:[#allocation2] sm:$0xff]
    %v85 = vld [vmem:[#allocation5] sm:$0xf]
    %v86 = vld [vmem:[#allocation5 + $0x4] sm:$0xf]
    %v87 = vld [vmem:[#allocation5 + $0x8] sm:$0xf]
    %v88 = vld [vmem:[#allocation5 + $0xc] sm:$0xf]
    %v89 = vpack.c.bf16 %v84, %v84
    %v94 = vunpack.c.l.b16 %v85
    %v95 = vunpack.c.l.b16 %v86
    %v96 = vunpack.c.l.b16 %v87
    %v97 = vunpack.c.l.b16 %v88
    %v98 = vpack.c.b16 %v95, %v94
    %v99 = vpack.c.b16 %v97, %v96
    %vm102 = vcmask 261120
    %v104 = vsel %vm102, %v89, 0
    %106 = vmatpush.bf16.msra.mxu0 0
    %107 = vmatpush.bf16.msra.mxu0 0
    %108 = vmatpush.bf16.msra.mxu0 0
    %109 = vmatpush.bf16.msra.mxu0 0
    %110 = vmatpush.bf16.msra.mxu0 0
    %111 = vmatpush.bf16.msra.mxu0 0
    %112 = vmatpush.bf16.msra.mxu0 %v99
    %113 = vmatpush.bf16.msra.mxu0 %v98
    %114 = vmatmul.bf16.gmra.mxu0 %v104
    %v115 = vpop.f32.mrf.mxu0
    %v116 = vadd.f32 0.0, %v115
    %v117 = vpop.f32.mrf.mxu0
    %118 = vdwg.mxu0
    %v119 = vld [vmem:[#allocation7] sm:$0x1]
    %v120 = vld [vmem:[%s3] sm:$0x1]
    %v121 = vrot.slane %v116, 4
    %v122 = vadd.f32 %v116, %v121
    %v123 = vrot.slane %v122, 2
    %v124 = vadd.f32 %v122, %v123
    %v125 = vrot.slane %v124, 1
    %v126 = vadd.f32 %v124, %v125
    %v127 = vrcp.pop 8.0
    %v128 = vmul.f32 8.0, %v127
    %v129 = vsub.f32 1.0, %v128
    %v130 = vmul.f32 %v127, %v129
    %v131 = vadd.f32 %v127, %v130
    %vm132 = vweird.f32 %v127
    %v133 = vsel %vm132, %v127, %v131
    %v134 = vmul.f32 %v126, %v133
    %v135 = vsub.f32 %v116, %v134
    %v136 = vmul.f32 %v135, %v135
    %v137 = vrot.slane %v136, 4
    %v138 = vadd.f32 %v136, %v137
    %v139 = vrot.slane %v138, 2
    %v140 = vadd.f32 %v138, %v139
    %v141 = vrot.slane %v140, 1
    %v142 = vadd.f32 %v140, %v141
    %v143 = vmul.f32 %v142, %v133
    %v144 = vadd.f32 %v143, 1e-05
    %v145 = vrsqrt.pop %v144
    %v146 = vmul.f32 %v145, %v144
    %v147 = vmul.f32 %v146, %v145
    %v148 = vmul.f32 0.5, %v147
    %v149 = vsub.f32 1.5, %v148
    %v150 = vmul.f32 %v145, %v149
    %vm151 = vweird.f32 %v144
    %vm152 = vweird.f32 %v145
    %vm153 = vmor %vm151, %vm152
    %v154 = vsel %vm153, %v145, %v150
    %v155 = vmul.f32 %v119, %v154
    %v157 = vperm.slane %v155, 0
    %v159 = vmul.f32 %v135, %v157
    %v161 = vperm.slane %v120, 0
    %v163 = vadd.f32 %v159, %v161
    %v164 = vmax.f32 %v163, 0.0
    %v165 = vld [vmem:[#allocation8] sm:$0xf]
    %v166 = vld [vmem:[#allocation8 + $0x4] sm:$0xf]
    %v167 = vld [vmem:[#allocation8 + $0x8] sm:$0xf]
    %v168 = vld [vmem:[#allocation8 + $0xc] sm:$0xf]
    %v169 = vld [vmem:[#allocation8 + $0x10] sm:$0xf]
    %v170 = vld [vmem:[#allocation8 + $0x14] sm:$0xf]
    %v171 = vld [vmem:[#allocation8 + $0x18] sm:$0xf]
    %v172 = vld [vmem:[#allocation8 + $0x1c] sm:$0xf]
    %v173 = vld [vmem:[#allocation8 + $0x20] sm:$0xf]
    %v174 = vld [vmem:[#allocation8 + $0x24] sm:$0xf]
    %v175 = vld [vmem:[#allocation8 + $0x28] sm:$0xf]
    %v176 = vld [vmem:[#allocation8 + $0x2c] sm:$0xf]
    %v177 = vld [vmem:[#allocation8 + $0x30] sm:$0xf]
    %v178 = vld [vmem:[#allocation8 + $0x34] sm:$0xf]
    %v179 = vld [vmem:[#allocation8 + $0x38] sm:$0xf]
    %v180 = vld [vmem:[#allocation8 + $0x3c] sm:$0xf]
    %v181 = vpack.c.bf16 %v164, %v164
    %v182 = vld [vmem:[%s5] sm:$0x1]
    %v184 = vperm.slane %v182, 0
    %v202 = vunpack.c.l.b16 %v165
    %v203 = vunpack.c.l.b16 %v166
    %v204 = vunpack.c.l.b16 %v167
    %v205 = vunpack.c.l.b16 %v168
    %v206 = vunpack.c.l.b16 %v169
    %v207 = vunpack.c.l.b16 %v170
    %v208 = vunpack.c.l.b16 %v171
    %v209 = vunpack.c.l.b16 %v172
    %v210 = vunpack.c.l.b16 %v173
    %v211 = vunpack.c.l.b16 %v174
    %v212 = vunpack.c.l.b16 %v175
    %v213 = vunpack.c.l.b16 %v176
    %v214 = vunpack.c.l.b16 %v177
    %v215 = vunpack.c.l.b16 %v178
    %v216 = vunpack.c.l.b16 %v179
    %v217 = vunpack.c.l.b16 %v180
    %v218 = vpack.c.b16 %v203, %v202
    %v219 = vpack.c.b16 %v205, %v204
    %v220 = vpack.c.b16 %v207, %v206
    %v221 = vpack.c.b16 %v209, %v208
    %v222 = vpack.c.b16 %v211, %v210
    %v223 = vpack.c.b16 %v213, %v212
    %v224 = vpack.c.b16 %v215, %v214
    %v225 = vpack.c.b16 %v217, %v216
    %234 = vmatpush.bf16.msra.mxu0 %v225
    %235 = vmatpush.bf16.msra.mxu0 %v224
    %236 = vmatpush.bf16.msra.mxu0 %v223
    %237 = vmatpush.bf16.msra.mxu0 %v222
    %238 = vmatpush.bf16.msra.mxu0 %v221
    %239 = vmatpush.bf16.msra.mxu0 %v220
    %240 = vmatpush.bf16.msra.mxu0 %v219
    %241 = vmatpush.bf16.msra.mxu0 %v218
    %242 = vmatmul.bf16.gmra.mxu0 %v181
    %v243 = vpop.f32.mrf.mxu0
    %v244 = vadd.f32 %v184, %v243
    %v245 = vpop.f32.mrf.mxu0
    %246 = vdwg.mxu0
    %247 = vst [vmem:[#allocation10] sm:$0xff] %v244
    // Predicated region
    $region42: #{_mlp_forward_impl.1} parent=1 // pred_check
      _
    $region43: #{_mlp_forward_impl.1} parent=1 // pred_check_branch
      %249 = sbr.rel (0) target = $region45
    $region44: #{_mlp_forward_impl.1} parent=1 // pred_region
      %251 = vsyncadd [#allocation4], 0
      %s253 = sshll.u32 [#allocation10], 4
      %s254 = int_to_ptr.vmem [resolvable:$true] %s253
      %s255 = sshll.u32 %s6, 4
      %s256 = int_to_ptr.hbm [resolvable:$true] %s255
      %258 = dma.vmem_to_hbm [thread:$0]  %s254, 128, %s256, [#allocation4]
    $region45: #{_mlp_forward_impl.1} parent=1 // pred_fallthru
      _
    // Predicated region
    $region46: #{_mlp_forward_impl.1} parent=1 // pred_check
      _
    $region47: #{_mlp_forward_impl.1} parent=1 // pred_check_branch
      %260 = sbr.rel (0) target = $region49
    $region48: #{_mlp_forward_impl.1} parent=1 // pred_region
      %262 = dma.done [#allocation4], 128
    $region49: #{_mlp_forward_impl.1} parent=1 // pred_fallthru
      _
    %263 = vsyncpa [#allocation3], 1
    %264 = vsyncpa [#allocation6], 1
    %265 = vsyncpa [#allocation9], 1
    %266 = vsyncpa [#allocation4], 1

</llo_original>
